<compile_context>
chip_gen: v7x
topology: tpu7x:2x2x1
jax: 0.10.0
libtpu: 0.0.40
codegen_flags: <defaults>
</compile_context>

<pallas_src>
import jax
import jax.numpy as jnp
from jax.experimental import pallas as pl
from jax.experimental.pallas import tpu as pltpu


# ---------------------------------------------------------------------------
# Fused kernel
# ---------------------------------------------------------------------------
def _fused_mlp_kernel(*refs):
    """refs = (x, w0, b0, w1, b1, ..., wL, bL, out).

    Layer 0 is the input layer (no activation after it), layers 1..L-1 are
    hidden blocks (Linear -> Dropout(identity, eval) -> ReLU), layer L is the
    output layer (no activation).
    """
    x_ref, o_ref = refs[0], refs[-1]
    wb = refs[1:-1]
    n_layers = len(wb) // 2

    x = x_ref[...]
    for li in range(n_layers):
        w = wb[2 * li][...]
        b = wb[2 * li + 1][...]
        x = jnp.dot(x, w, preferred_element_type=jnp.float32) + b
        if 0 < li < n_layers - 1:           # ReLU only after hidden Linears
            x = jnp.maximum(x, 0.0)
        # TODO(synk): training-mode dropout (random mask * 1/(1-p)) not
        # implemented; eval-mode (identity) semantics only.
    o_ref[...] = x.astype(o_ref.dtype)


# ---------------------------------------------------------------------------
# Wrapper: padding to lane/sublane-dense shapes + single pallas_call
# ---------------------------------------------------------------------------
def _round_up(n, m):
    return ((n + m - 1) // m) * m


def _pad2d(a, rows, cols):
    return jnp.pad(a, ((0, rows - a.shape[0]), (0, cols - a.shape[1])))


_BATCH_TILE = 256  # rows per grid step once the batch is large


def mlp_predictor_forward(params, input_batch):
    """input_batch: (B, seq_len, input_dim) f32 -> (B, output_dim) f32."""
    B = input_batch.shape[0]
    flat = input_batch.reshape(B, -1)          # == torch .view(batch, -1)
    d_in = flat.shape[1]
    output_dim = params["output"][0].shape[1]

    # Lane/sublane-dense padded working sizes.
    b_pad = _round_up(max(B, 8), 8)
    if b_pad > _BATCH_TILE:
        b_pad = _round_up(b_pad, _BATCH_TILE)
        tb = _BATCH_TILE
    else:
        tb = b_pad
    nb = b_pad // tb

    din_pad = _round_up(d_in, 128)
    h_pad = _round_up(params["input"][0].shape[1], 128)
    o_pad = _round_up(output_dim, 128)

    # (weight, bias) list in execution order, zero-padded (exact).
    layers = [params["input"]] + list(params["hidden"]) + [params["output"]]
    in_dims = [din_pad] + [h_pad] * (len(layers) - 1)
    out_dims = [h_pad] * (len(layers) - 1) + [o_pad]

    operands = [_pad2d(flat, b_pad, din_pad)]
    in_specs = [pl.BlockSpec((tb, din_pad), lambda i: (i, 0))]
    for (w, b), di, do in zip(layers, in_dims, out_dims):
        operands += [_pad2d(w, di, do), _pad2d(b, 1, do)]
        # Constant block index -> weights/biases stay resident across the
        # batch grid (no re-DMA per step).
        in_specs += [pl.BlockSpec((di, do), lambda i: (0, 0)),
                     pl.BlockSpec((1, do), lambda i: (0, 0))]

    out_padded = pl.pallas_call(
        _fused_mlp_kernel,
        out_shape=jax.ShapeDtypeStruct((b_pad, o_pad), flat.dtype),
        grid=(nb,),
        in_specs=in_specs,
        out_specs=pl.BlockSpec((tb, o_pad), lambda i: (i, 0)),
        compiler_params=pltpu.CompilerParams(
            dimension_semantics=("parallel",)),
    )(*operands)

    return out_padded[:B, :output_dim]


# ---------------------------------------------------------------------------
# Parameter init (matches nn.Linear default: U(-1/sqrt(fan_in), 1/sqrt(fan_in)))
# Weights stored transposed vs. PyTorch: (fan_in, fan_out); bias: (1, fan_out).
# ---------------------------------------------------------------------------
def _torch_linear_init(key, fan_in, fan_out):
    k = 1.0 / jnp.sqrt(jnp.float32(fan_in))
    kw, kb = jax.random.split(key)
    w = jax.random.uniform(kw, (fan_in, fan_out), jnp.float32, -k, k)
    b = jax.random.uniform(kb, (1, fan_out), jnp.float32, -k, k)
    return w, b


def init_mlp_predictor_params(key, input_dim, hidden_dim, output_dim,
                              num_hidden_layers, seq_len):
    keys = jax.random.split(key, num_hidden_layers + 2)
    return {
        "input": _torch_linear_init(keys[0], input_dim * seq_len, hidden_dim),
        "hidden": [
            _torch_linear_init(keys[1 + i], hidden_dim, hidden_dim)
            for i in range(num_hidden_layers)
        ],
        "output": _torch_linear_init(keys[-1], hidden_dim, output_dim),
    }


# ---------------------------------------------------------------------------
# Pure-JAX reference (same math, no Pallas) for a correctness cross-check.
# ---------------------------------------------------------------------------
def _reference_forward(params, input_batch):
    B = input_batch.shape[0]
    x = input_batch.reshape(B, -1)
    w, b = params["input"]
    x = x @ w + b
    for (w, b) in params["hidden"]:
        x = jnp.maximum(x @ w + b, 0.0)
    w, b = params["output"]
    return x @ w + b


if __name__ == "__main__":
    key = jax.random.PRNGKey(0)
    k_params, k_x = jax.random.split(key)

    # Small shapes consistent with the module's forward.
    batch = 4
    seq_len = 5
    input_dim = 8
    hidden_dim = 32
    output_dim = 4
    num_hidden_layers = 2

    params = init_mlp_predictor_params(
        k_params, input_dim, hidden_dim, output_dim, num_hidden_layers, seq_len
    )
    x = jax.random.normal(k_x, (batch, seq_len, input_dim), jnp.float32)

    fwd = jax.jit(mlp_predictor_forward)
    y = fwd(params, x)
    jax.block_until_ready(y)

    assert y.shape == (batch, output_dim)
    y_ref = _reference_forward(params, x)
    assert jnp.allclose(y, y_ref, rtol=1e-2, atol=1e-2), "mismatch vs reference"
    print("KERNEL_OK")
</pallas_src>

<mosaic_0001>
module attributes {stable_mosaic.version = 11 : i64} {
  func.func @_fused_mlp_kernel(%arg0: i32, %arg1: memref<8x128xf32, #tpu.memory_space<vmem>>, %arg2: memref<128x128xf32, #tpu.memory_space<vmem>>, %arg3: memref<1x128xf32, #tpu.memory_space<vmem>>, %arg4: memref<128x128xf32, #tpu.memory_space<vmem>>, %arg5: memref<1x128xf32, #tpu.memory_space<vmem>>, %arg6: memref<128x128xf32, #tpu.memory_space<vmem>>, %arg7: memref<1x128xf32, #tpu.memory_space<vmem>>, %arg8: memref<128x128xf32, #tpu.memory_space<vmem>>, %arg9: memref<1x128xf32, #tpu.memory_space<vmem>>, %arg10: memref<8x128xf32, #tpu.memory_space<vmem>>) attributes {dimension_semantics = [#tpu.dimension_semantics<parallel>], iteration_bounds = array<i64: 1>, scalar_prefetch = 0 : i64, scratch_operands = 0 : i64, tpu.core_type = #tpu.core_type<tc>, window_params = [{transform_indices = @transform_0, window_bounds = array<i64: 8, 128>}, {pipeline_mode = #tpu.pipeline_mode<synchronous>, transform_indices = @transform_1, window_bounds = array<i64: 128, 128>}, {pipeline_mode = #tpu.pipeline_mode<synchronous>, transform_indices = @transform_2, window_bounds = array<i64: 1, 128>}, {pipeline_mode = #tpu.pipeline_mode<synchronous>, transform_indices = @transform_3, window_bounds = array<i64: 128, 128>}, {pipeline_mode = #tpu.pipeline_mode<synchronous>, transform_indices = @transform_4, window_bounds = array<i64: 1, 128>}, {pipeline_mode = #tpu.pipeline_mode<synchronous>, transform_indices = @transform_5, window_bounds = array<i64: 128, 128>}, {pipeline_mode = #tpu.pipeline_mode<synchronous>, transform_indices = @transform_6, window_bounds = array<i64: 1, 128>}, {pipeline_mode = #tpu.pipeline_mode<synchronous>, transform_indices = @transform_7, window_bounds = array<i64: 128, 128>}, {pipeline_mode = #tpu.pipeline_mode<synchronous>, transform_indices = @transform_8, window_bounds = array<i64: 1, 128>}, {transform_indices = @transform_9, window_bounds = array<i64: 8, 128>}]} {
    %c0 = arith.constant 0 : index
    %c0_0 = arith.constant 0 : index
    %0 = vector.load %arg1[%c0, %c0_0] : memref<8x128xf32, #tpu.memory_space<vmem>>, vector<8x128xf32>
    %c0_1 = arith.constant 0 : index
    %c0_2 = arith.constant 0 : index
    %1 = vector.load %arg2[%c0_1, %c0_2] : memref<128x128xf32, #tpu.memory_space<vmem>>, vector<128x128xf32>
    %c0_3 = arith.constant 0 : index
    %c0_4 = arith.constant 0 : index
    %2 = vector.load %arg3[%c0_3, %c0_4] : memref<1x128xf32, #tpu.memory_space<vmem>>, vector<1x128xf32>
    %cst = arith.constant dense<0.000000e+00> : vector<8x128xf32>
    %3 = tpu.matmul %0, %1, %cst {dimension_numbers = #tpu.dot_dimension_numbers<[1], [0], [0], [1], [0, 0, 1, 1], [], []>} : vector<8x128xf32>, vector<128x128xf32>, vector<8x128xf32> -> vector<8x128xf32>
    %4 = vector.broadcast %2 : vector<1x128xf32> to vector<8x128xf32>
    %5 = arith.addf %3, %4 : vector<8x128xf32>
    %c0_5 = arith.constant 0 : index
    %c0_6 = arith.constant 0 : index
    %6 = vector.load %arg4[%c0_5, %c0_6] : memref<128x128xf32, #tpu.memory_space<vmem>>, vector<128x128xf32>
    %c0_7 = arith.constant 0 : index
    %c0_8 = arith.constant 0 : index
    %7 = vector.load %arg5[%c0_7, %c0_8] : memref<1x128xf32, #tpu.memory_space<vmem>>, vector<1x128xf32>
    %cst_9 = arith.constant dense<0.000000e+00> : vector<8x128xf32>
    %8 = tpu.matmul %5, %6, %cst_9 {dimension_numbers = #tpu.dot_dimension_numbers<[1], [0], [0], [1], [0, 0, 1, 1], [], []>} : vector<8x128xf32>, vector<128x128xf32>, vector<8x128xf32> -> vector<8x128xf32>
    %9 = vector.broadcast %7 : vector<1x128xf32> to vector<8x128xf32>
    %10 = arith.addf %8, %9 : vector<8x128xf32>
    %cst_10 = arith.constant 0.000000e+00 : f32
    %11 = vector.broadcast %cst_10 : f32 to vector<8x128xf32>
    %12 = arith.maximumf %10, %11 : vector<8x128xf32>
    %c0_11 = arith.constant 0 : index
    %c0_12 = arith.constant 0 : index
    %13 = vector.load %arg6[%c0_11, %c0_12] : memref<128x128xf32, #tpu.memory_space<vmem>>, vector<128x128xf32>
    %c0_13 = arith.constant 0 : index
    %c0_14 = arith.constant 0 : index
    %14 = vector.load %arg7[%c0_13, %c0_14] : memref<1x128xf32, #tpu.memory_space<vmem>>, vector<1x128xf32>
    %cst_15 = arith.constant dense<0.000000e+00> : vector<8x128xf32>
    %15 = tpu.matmul %12, %13, %cst_15 {dimension_numbers = #tpu.dot_dimension_numbers<[1], [0], [0], [1], [0, 0, 1, 1], [], []>} : vector<8x128xf32>, vector<128x128xf32>, vector<8x128xf32> -> vector<8x128xf32>
    %16 = vector.broadcast %14 : vector<1x128xf32> to vector<8x128xf32>
    %17 = arith.addf %15, %16 : vector<8x128xf32>
    %cst_16 = arith.constant 0.000000e+00 : f32
    %18 = vector.broadcast %cst_16 : f32 to vector<8x128xf32>
    %19 = arith.maximumf %17, %18 : vector<8x128xf32>
    %c0_17 = arith.constant 0 : index
    %c0_18 = arith.constant 0 : index
    %20 = vector.load %arg8[%c0_17, %c0_18] : memref<128x128xf32, #tpu.memory_space<vmem>>, vector<128x128xf32>
    %c0_19 = arith.constant 0 : index
    %c0_20 = arith.constant 0 : index
    %21 = vector.load %arg9[%c0_19, %c0_20] : memref<1x128xf32, #tpu.memory_space<vmem>>, vector<1x128xf32>
    %cst_21 = arith.constant dense<0.000000e+00> : vector<8x128xf32>
    %22 = tpu.matmul %19, %20, %cst_21 {dimension_numbers = #tpu.dot_dimension_numbers<[1], [0], [0], [1], [0, 0, 1, 1], [], []>} : vector<8x128xf32>, vector<128x128xf32>, vector<8x128xf32> -> vector<8x128xf32>
    %23 = vector.broadcast %21 : vector<1x128xf32> to vector<8x128xf32>
    %24 = arith.addf %22, %23 : vector<8x128xf32>
    %c0_22 = arith.constant 0 : index
    %c0_23 = arith.constant 0 : index
    %25 = vector.load %arg10[%c0_22, %c0_23] : memref<8x128xf32, #tpu.memory_space<vmem>>, vector<8x128xf32>
    tpu.vector_store %arg10[%c0_22, %c0_23], %24 {strides = array<i32>} : memref<8x128xf32, #tpu.memory_space<vmem>>, vector<8x128xf32>,
    return
  }
  func.func @transform_0(%arg0: i32) -> (i32, i32) {
    %c0_i32 = arith.constant 0 : i32
    %c0_i32_0 = arith.constant 0 : i32
    return %arg0, %c0_i32 : i32, i32
  }
  func.func @transform_1(%arg0: i32) -> (i32, i32) {
    %c0_i32 = arith.constant 0 : i32
    %c0_i32_0 = arith.constant 0 : i32
    %c0_i32_1 = arith.constant 0 : i32
    return %c0_i32, %c0_i32_0 : i32, i32
  }
  func.func @transform_2(%arg0: i32) -> (i32, i32) {
    %c0_i32 = arith.constant 0 : i32
    %c0_i32_0 = arith.constant 0 : i32
    %c0_i32_1 = arith.constant 0 : i32
    return %c0_i32, %c0_i32_0 : i32, i32
  }
  func.func @transform_3(%arg0: i32) -> (i32, i32) {
    %c0_i32 = arith.constant 0 : i32
    %c0_i32_0 = arith.constant 0 : i32
    %c0_i32_1 = arith.constant 0 : i32
    return %c0_i32, %c0_i32_0 : i32, i32
  }
  func.func @transform_4(%arg0: i32) -> (i32, i32) {
    %c0_i32 = arith.constant 0 : i32
    %c0_i32_0 = arith.constant 0 : i32
    %c0_i32_1 = arith.constant 0 : i32
    return %c0_i32, %c0_i32_0 : i32, i32
  }
  func.func @transform_5(%arg0: i32) -> (i32, i32) {
    %c0_i32 = arith.constant 0 : i32
    %c0_i32_0 = arith.constant 0 : i32
    %c0_i32_1 = arith.constant 0 : i32
    return %c0_i32, %c0_i32_0 : i32, i32
  }
  func.func @transform_6(%arg0: i32) -> (i32, i32) {
    %c0_i32 = arith.constant 0 : i32
    %c0_i32_0 = arith.constant 0 : i32
    %c0_i32_1 = arith.constant 0 : i32
    return %c0_i32, %c0_i32_0 : i32, i32
  }
  func.func @transform_7(%arg0: i32) -> (i32, i32) {
    %c0_i32 = arith.constant 0 : i32
    %c0_i32_0 = arith.constant 0 : i32
    %c0_i32_1 = arith.constant 0 : i32
    return %c0_i32, %c0_i32_0 : i32, i32
  }
  func.func @transform_8(%arg0: i32) -> (i32, i32) {
    %c0_i32 = arith.constant 0 : i32
    %c0_i32_0 = arith.constant 0 : i32
    %c0_i32_1 = arith.constant 0 : i32
    return %c0_i32, %c0_i32_0 : i32, i32
  }
  func.func @transform_9(%arg0: i32) -> (i32, i32) {
    %c0_i32 = arith.constant 0 : i32
    %c0_i32_0 = arith.constant 0 : i32
    return %arg0, %c0_i32 : i32, i32
  }
}

</mosaic_0001>

<llo_original>
// kernel: mlp_predictor_forward.1
$region0: #{mlp_predictor_forward.1}
  #allocation0 [shape = 'u32[]', space=smem, size = 0x4, offset = 0x4, fixed_abs, tag = 'smem constant byte address 0x4 - core index']
  #allocation1 [shape = 'u32[144,128]{1,0:T(1,128)}', space=vmem, size = 0x12000, scoped, tag = 'internal scratch']
  %s0 = inlined_call_operand.vmem [shape: f32[8,128], index: 0, kind: input, shape index: {}]
  %s1 = inlined_call_operand.vmem [shape: f32[128,128], index: 1, kind: input, shape index: {}]
  %s2 = inlined_call_operand.vmem [shape: f32[1,128], index: 2, kind: input, shape index: {}]
  %s3 = inlined_call_operand.vmem [shape: f32[128,128], index: 3, kind: input, shape index: {}]
  %s4 = inlined_call_operand.vmem [shape: f32[1,128], index: 4, kind: input, shape index: {}]
  %s5 = inlined_call_operand.vmem [shape: f32[128,128], index: 5, kind: input, shape index: {}]
  %s6 = inlined_call_operand.vmem [shape: f32[1,128], index: 6, kind: input, shape index: {}]
  %s7 = inlined_call_operand.vmem [shape: f32[128,128], index: 7, kind: input, shape index: {}]
  %s8 = inlined_call_operand.vmem [shape: f32[1,128], index: 8, kind: input, shape index: {}]
  %s9 = inlined_call_operand.vmem [shape: f32[8,128], index: 9, kind: output, shape index: {}]
  %s10 = sld [smem:[#allocation0]]
  $region46: #{mlp_predictor_forward.1} parent=0
    _
  %s12 = ssub.s32 1, %s10
  %s13 = scalar_select 0, %s12, %s10
  // Predicated region
  $region2: #{mlp_predictor_forward.1} parent=0 // pred_check
    _
  $region3: #{mlp_predictor_forward.1} parent=0 // pred_check_branch
    %15 = sbr.rel (0) target = $region5
  $region4: #{mlp_predictor_forward.1} parent=0 // pred_region
    _
  $region5: #{mlp_predictor_forward.1} parent=0 // pred_fallthru
    _
  // Predicated region
  $region6: #{mlp_predictor_forward.1} parent=0 // pred_check
    _
  $region7: #{mlp_predictor_forward.1} parent=0 // pred_check_branch
    %17 = sbr.rel (0) target = $region9
  $region8: #{mlp_predictor_forward.1} parent=0 // pred_region
    _
  $region9: #{mlp_predictor_forward.1} parent=0 // pred_fallthru
    _
  // Predicated region
  $region10: #{mlp_predictor_forward.1} parent=0 // pred_check
    _
  $region11: #{mlp_predictor_forward.1} parent=0 // pred_check_branch
    %19 = sbr.rel (0) target = $region13
  $region12: #{mlp_predictor_forward.1} parent=0 // pred_region
    _
  $region13: #{mlp_predictor_forward.1} parent=0 // pred_fallthru
    _
  // Predicated region
  $region14: #{mlp_predictor_forward.1} parent=0 // pred_check
    _
  $region15: #{mlp_predictor_forward.1} parent=0 // pred_check_branch
    %21 = sbr.rel (0) target = $region17
  $region16: #{mlp_predictor_forward.1} parent=0 // pred_region
    _
  $region17: #{mlp_predictor_forward.1} parent=0 // pred_fallthru
    _
  // Predicated region
  $region18: #{mlp_predictor_forward.1} parent=0 // pred_check
    _
  $region19: #{mlp_predictor_forward.1} parent=0 // pred_check_branch
    %23 = sbr.rel (0) target = $region21
  $region20: #{mlp_predictor_forward.1} parent=0 // pred_region
    _
  $region21: #{mlp_predictor_forward.1} parent=0 // pred_fallthru
    _
  // Predicated region
  $region22: #{mlp_predictor_forward.1} parent=0 // pred_check
    _
  $region23: #{mlp_predictor_forward.1} parent=0 // pred_check_branch
    %25 = sbr.rel (0) target = $region25
  $region24: #{mlp_predictor_forward.1} parent=0 // pred_region
    _
  $region25: #{mlp_predictor_forward.1} parent=0 // pred_fallthru
    _
  // Predicated region
  $region26: #{mlp_predictor_forward.1} parent=0 // pred_check
    _
  $region27: #{mlp_predictor_forward.1} parent=0 // pred_check_branch
    %27 = sbr.rel (0) target = $region29
  $region28: #{mlp_predictor_forward.1} parent=0 // pred_region
    _
  $region29: #{mlp_predictor_forward.1} parent=0 // pred_fallthru
    _
  // Predicated region
  $region30: #{mlp_predictor_forward.1} parent=0 // pred_check
    _
  $region31: #{mlp_predictor_forward.1} parent=0 // pred_check_branch
    %29 = sbr.rel (0) target = $region33
  $region32: #{mlp_predictor_forward.1} parent=0 // pred_region
    _
  $region33: #{mlp_predictor_forward.1} parent=0 // pred_fallthru
    _
  // Predicated region
  $region34: #{mlp_predictor_forward.1} parent=0 // pred_check
    _
  $region35: #{mlp_predictor_forward.1} parent=0 // pred_check_branch
    %31 = sbr.rel (0) target = $region37
  $region36: #{mlp_predictor_forward.1} parent=0 // pred_region
    _
  $region37: #{mlp_predictor_forward.1} parent=0 // pred_fallthru
    _
  %v32 = vld [vmem:[%s0] sm:$0xff]
  %v33 = vld [vmem:[%s1] sm:$0xff]
  %v34 = vld [vmem:[%s1 + $0x8] sm:$0xff]
  %v35 = vld [vmem:[%s1 + $0x10] sm:$0xff]
  %v36 = vld [vmem:[%s1 + $0x18] sm:$0xff]
  %v37 = vld [vmem:[%s1 + $0x20] sm:$0xff]
  %v38 = vld [vmem:[%s1 + $0x28] sm:$0xff]
  %v39 = vld [vmem:[%s1 + $0x30] sm:$0xff]
  %v40 = vld [vmem:[%s1 + $0x38] sm:$0xff]
  %v41 = vld [vmem:[%s1 + $0x40] sm:$0xff]
  %v42 = vld [vmem:[%s1 + $0x48] sm:$0xff]
  %v43 = vld [vmem:[%s1 + $0x50] sm:$0xff]
  %v44 = vld [vmem:[%s1 + $0x58] sm:$0xff]
  %v45 = vld [vmem:[%s1 + $0x60] sm:$0xff]
  %v46 = vld [vmem:[%s1 + $0x68] sm:$0xff]
  %v47 = vld [vmem:[%s1 + $0x70] sm:$0xff]
  %v48 = vld [vmem:[%s1 + $0x78] sm:$0xff]
  %v49 = vld [vmem:[%s2] sm:$0x1]
  %v51 = vlaneseq
  %v52 = vshrl.u32 %v51, 7
  %v53 = vsub.s32 0, %v52
  %v54 = vrot.slane %v49, %v53
  %56 = vmatprep.subr.mxu0 0.0
  %57 = vmatpush1.msra.mxu0 %v33
  %58 = vmatprep.subr.mxu0 0.0
  %59 = vmatpush1.msra.mxu0 %v34
  %60 = vmatprep.subr.mxu0 0.0
  %61 = vmatpush1.msra.mxu0 %v35
  %62 = vmatprep.subr.mxu0 0.0
  %63 = vmatpush1.msra.mxu0 %v36
  %64 = vmatprep.subr.mxu0 0.0
  %65 = vmatpush1.msra.mxu0 %v37
  %66 = vmatprep.subr.mxu0 0.0
  %67 = vmatpush1.msra.mxu0 %v38
  %68 = vmatprep.subr.mxu0 0.0
  %69 = vmatpush1.msra.mxu0 %v39
  %70 = vmatprep.subr.mxu0 0.0
  %71 = vmatpush1.msra.mxu0 %v40
  %72 = vmatprep.subr.mxu0 0.0
  %73 = vmatpush1.msra.mxu0 %v41
  %74 = vmatprep.subr.mxu0 0.0
  %75 = vmatpush1.msra.mxu0 %v42
  %76 = vmatprep.subr.mxu0 0.0
  %77 = vmatpush1.msra.mxu0 %v43
  %78 = vmatprep.subr.mxu0 0.0
  %79 = vmatpush1.msra.mxu0 %v44
  %80 = vmatprep.subr.mxu0 0.0
  %81 = vmatpush1.msra.mxu0 %v45
  %82 = vmatprep.subr.mxu0 0.0
  %83 = vmatpush1.msra.mxu0 %v46
  %84 = vmatprep.subr.mxu0 0.0
  %85 = vmatpush1.msra.mxu0 %v47
  %86 = vmatprep.subr.mxu0 0.0
  %87 = vmatpush1.msra.mxu0 %v48
  %88 = vmatprep.subr.mxu0 0.0
  %89 = vmatpush1.msra.mxu0 0.0
  %90 = vmatprep.subr.mxu0 0.0
  %91 = vmatpush1.msra.mxu0 0.0
  %92 = vmatprep.subr.mxu0 0.0
  %93 = vmatpush1.msra.mxu0 0.0
  %94 = vmatprep.subr.mxu0 0.0
  %95 = vmatpush1.msra.mxu0 0.0
  %96 = vmatprep.subr.mxu0 0.0
  %97 = vmatpush1.msra.mxu0 0.0
  %98 = vmatprep.subr.mxu0 0.0
  %99 = vmatpush1.msra.mxu0 0.0
  %100 = vmatprep.subr.mxu0 0.0
  %101 = vmatpush1.msra.mxu0 0.0
  %102 = vmatprep.subr.mxu0 0.0
  %103 = vmatpush1.msra.mxu0 0.0
  %104 = vmatprep.subr.mxu0 0.0
  %105 = vmatpush1.msra.mxu0 0.0
  %106 = vmatprep.subr.mxu0 0.0
  %107 = vmatpush1.msra.mxu0 0.0
  %108 = vmatprep.subr.mxu0 0.0
  %109 = vmatpush1.msra.mxu0 0.0
  %110 = vmatprep.subr.mxu0 0.0
  %111 = vmatpush1.msra.mxu0 0.0
  %112 = vmatprep.subr.mxu0 0.0
  %113 = vmatpush1.msra.mxu0 0.0
  %114 = vmatprep.subr.mxu0 0.0
  %115 = vmatpush1.msra.mxu0 0.0
  %116 = vmatprep.subr.mxu0 0.0
  %117 = vmatpush1.msra.mxu0 0.0
  %118 = vmatprep.subr.mxu0 0.0
  %119 = vmatpush1.msra.mxu0 0.0
  %120 = vmatprep.mubr.f32.mxu0 0.0
  %121 = vmatmul.mubr.f32.gmra.mrb[0].mxu0 %v32
  %v122 = vpop.f32.mrb[0].mxu0
  %v123 = vadd.f32 %v54, %v122
  %v124 = vpop.f32.mrb[0].mxu0
  %125 = vdwg.mxu0
  %v126 = vld [vmem:[%s3] sm:$0xff]
  %v127 = vld [vmem:[%s3 + $0x8] sm:$0xff]
  %v128 = vld [vmem:[%s3 + $0x10] sm:$0xff]
  %v129 = vld [vmem:[%s3 + $0x18] sm:$0xff]
  %v130 = vld [vmem:[%s3 + $0x20] sm:$0xff]
  %v131 = vld [vmem:[%s3 + $0x28] sm:$0xff]
  %v132 = vld [vmem:[%s3 + $0x30] sm:$0xff]
  %v133 = vld [vmem:[%s3 + $0x38] sm:$0xff]
  %v134 = vld [vmem:[%s3 + $0x40] sm:$0xff]
  %v135 = vld [vmem:[%s3 + $0x48] sm:$0xff]
  %v136 = vld [vmem:[%s3 + $0x50] sm:$0xff]
  %v137 = vld [vmem:[%s3 + $0x58] sm:$0xff]
  %v138 = vld [vmem:[%s3 + $0x60] sm:$0xff]
  %v139 = vld [vmem:[%s3 + $0x68] sm:$0xff]
  %v140 = vld [vmem:[%s3 + $0x70] sm:$0xff]
  %v141 = vld [vmem:[%s3 + $0x78] sm:$0xff]
  %v142 = vld [vmem:[%s4] sm:$0x1]
  %v144 = vlaneseq
  %v145 = vshrl.u32 %v144, 7
  %v146 = vsub.s32 0, %v145
  %v147 = vrot.slane %v142, %v146
  %149 = vmatprep.subr.mxu0 0.0
  %150 = vmatpush1.msra.mxu0 %v126
  %151 = vmatprep.subr.mxu0 0.0
  %152 = vmatpush1.msra.mxu0 %v127
  %153 = vmatprep.subr.mxu0 0.0
  %154 = vmatpush1.msra.mxu0 %v128
  %155 = vmatprep.subr.mxu0 0.0
  %156 = vmatpush1.msra.mxu0 %v129
  %157 = vmatprep.subr.mxu0 0.0
  %158 = vmatpush1.msra.mxu0 %v130
  %159 = vmatprep.subr.mxu0 0.0
  %160 = vmatpush1.msra.mxu0 %v131
  %161 = vmatprep.subr.mxu0 0.0
  %162 = vmatpush1.msra.mxu0 %v132
  %163 = vmatprep.subr.mxu0 0.0
  %164 = vmatpush1.msra.mxu0 %v133
  %165 = vmatprep.subr.mxu0 0.0
  %166 = vmatpush1.msra.mxu0 %v134
  %167 = vmatprep.subr.mxu0 0.0
  %168 = vmatpush1.msra.mxu0 %v135
  %169 = vmatprep.subr.mxu0 0.0
  %170 = vmatpush1.msra.mxu0 %v136
  %171 = vmatprep.subr.mxu0 0.0
  %172 = vmatpush1.msra.mxu0 %v137
  %173 = vmatprep.subr.mxu0 0.0
  %174 = vmatpush1.msra.mxu0 %v138
  %175 = vmatprep.subr.mxu0 0.0
  %176 = vmatpush1.msra.mxu0 %v139
  %177 = vmatprep.subr.mxu0 0.0
  %178 = vmatpush1.msra.mxu0 %v140
  %179 = vmatprep.subr.mxu0 0.0
  %180 = vmatpush1.msra.mxu0 %v141
  %181 = vmatprep.subr.mxu0 0.0
  %182 = vmatpush1.msra.mxu0 0.0
  %183 = vmatprep.subr.mxu0 0.0
  %184 = vmatpush1.msra.mxu0 0.0
  %185 = vmatprep.subr.mxu0 0.0
  %186 = vmatpush1.msra.mxu0 0.0
  %187 = vmatprep.subr.mxu0 0.0
  %188 = vmatpush1.msra.mxu0 0.0
  %189 = vmatprep.subr.mxu0 0.0
  %190 = vmatpush1.msra.mxu0 0.0
  %191 = vmatprep.subr.mxu0 0.0
  %192 = vmatpush1.msra.mxu0 0.0
  %193 = vmatprep.subr.mxu0 0.0
  %194 = vmatpush1.msra.mxu0 0.0
  %195 = vmatprep.subr.mxu0 0.0
  %196 = vmatpush1.msra.mxu0 0.0
  %197 = vmatprep.subr.mxu0 0.0
  %198 = vmatpush1.msra.mxu0 0.0
  %199 = vmatprep.subr.mxu0 0.0
  %200 = vmatpush1.msra.mxu0 0.0
  %201 = vmatprep.subr.mxu0 0.0
  %202 = vmatpush1.msra.mxu0 0.0
  %203 = vmatprep.subr.mxu0 0.0
  %204 = vmatpush1.msra.mxu0 0.0
  %205 = vmatprep.subr.mxu0 0.0
  %206 = vmatpush1.msra.mxu0 0.0
  %207 = vmatprep.subr.mxu0 0.0
  %208 = vmatpush1.msra.mxu0 0.0
  %209 = vmatprep.subr.mxu0 0.0
  %210 = vmatpush1.msra.mxu0 0.0
  %211 = vmatprep.subr.mxu0 0.0
  %212 = vmatpush1.msra.mxu0 0.0
  %213 = vmatprep.mubr.f32.mxu0 0.0
  %214 = vmatmul.mubr.f32.gmra.mrb[0].mxu0 %v123
  %v215 = vpop.f32.mrb[0].mxu0
  %v216 = vadd.f32 %v147, %v215
  %v217 = vpop.f32.mrb[0].mxu0
  %218 = vdwg.mxu0
  %v219 = vmax.f32 %v216, 0.0
  %v220 = vld [vmem:[%s5] sm:$0xff]
  %v221 = vld [vmem:[%s5 + $0x8] sm:$0xff]
  %v222 = vld [vmem:[%s5 + $0x10] sm:$0xff]
  %v223 = vld [vmem:[%s5 + $0x18] sm:$0xff]
  %v224 = vld [vmem:[%s5 + $0x20] sm:$0xff]
  %v225 = vld [vmem:[%s5 + $0x28] sm:$0xff]
  %v226 = vld [vmem:[%s5 + $0x30] sm:$0xff]
  %v227 = vld [vmem:[%s5 + $0x38] sm:$0xff]
  %v228 = vld [vmem:[%s5 + $0x40] sm:$0xff]
  %v229 = vld [vmem:[%s5 + $0x48] sm:$0xff]
  %v230 = vld [vmem:[%s5 + $0x50] sm:$0xff]
  %v231 = vld [vmem:[%s5 + $0x58] sm:$0xff]
  %v232 = vld [vmem:[%s5 + $0x60] sm:$0xff]
  %v233 = vld [vmem:[%s5 + $0x68] sm:$0xff]
  %v234 = vld [vmem:[%s5 + $0x70] sm:$0xff]
  %v235 = vld [vmem:[%s5 + $0x78] sm:$0xff]
  %v236 = vld [vmem:[%s6] sm:$0x1]
  %v238 = vlaneseq
  %v239 = vshrl.u32 %v238, 7
  %v240 = vsub.s32 0, %v239
  %v241 = vrot.slane %v236, %v240
  %243 = vmatprep.subr.mxu0 0.0
  %244 = vmatpush1.msra.mxu0 %v220
  %245 = vmatprep.subr.mxu0 0.0
  %246 = vmatpush1.msra.mxu0 %v221
  %247 = vmatprep.subr.mxu0 0.0
  %248 = vmatpush1.msra.mxu0 %v222
  %249 = vmatprep.subr.mxu0 0.0
  %250 = vmatpush1.msra.mxu0 %v223
  %251 = vmatprep.subr.mxu0 0.0
  %252 = vmatpush1.msra.mxu0 %v224
  %253 = vmatprep.subr.mxu0 0.0
  %254 = vmatpush1.msra.mxu0 %v225
  %255 = vmatprep.subr.mxu0 0.0
  %256 = vmatpush1.msra.mxu0 %v226
  %257 = vmatprep.subr.mxu0 0.0
  %258 = vmatpush1.msra.mxu0 %v227
  %259 = vmatprep.subr.mxu0 0.0
  %260 = vmatpush1.msra.mxu0 %v228
  %261 = vmatprep.subr.mxu0 0.0
  %262 = vmatpush1.msra.mxu0 %v229
  %263 = vmatprep.subr.mxu0 0.0
  %264 = vmatpush1.msra.mxu0 %v230
  %265 = vmatprep.subr.mxu0 0.0
  %266 = vmatpush1.msra.mxu0 %v231
  %267 = vmatprep.subr.mxu0 0.0
  %268 = vmatpush1.msra.mxu0 %v232
  %269 = vmatprep.subr.mxu0 0.0
  %270 = vmatpush1.msra.mxu0 %v233
  %271 = vmatprep.subr.mxu0 0.0
  %272 = vmatpush1.msra.mxu0 %v234
  %273 = vmatprep.subr.mxu0 0.0
  %274 = vmatpush1.msra.mxu0 %v235
  %275 = vmatprep.subr.mxu0 0.0
  %276 = vmatpush1.msra.mxu0 0.0
  %277 = vmatprep.subr.mxu0 0.0
  %278 = vmatpush1.msra.mxu0 0.0
  %279 = vmatprep.subr.mxu0 0.0
  %280 = vmatpush1.msra.mxu0 0.0
  %281 = vmatprep.subr.mxu0 0.0
  %282 = vmatpush1.msra.mxu0 0.0
  %283 = vmatprep.subr.mxu0 0.0
  %284 = vmatpush1.msra.mxu0 0.0
  %285 = vmatprep.subr.mxu0 0.0
  %286 = vmatpush1.msra.mxu0 0.0
  %287 = vmatprep.subr.mxu0 0.0
  %288 = vmatpush1.msra.mxu0 0.0
  %289 = vmatprep.subr.mxu0 0.0
  %290 = vmatpush1.msra.mxu0 0.0
  %291 = vmatprep.subr.mxu0 0.0
  %292 = vmatpush1.msra.mxu0 0.0
  %293 = vmatprep.subr.mxu0 0.0
  %294 = vmatpush1.msra.mxu0 0.0
  %295 = vmatprep.subr.mxu0 0.0
  %296 = vmatpush1.msra.mxu0 0.0
  %297 = vmatprep.subr.mxu0 0.0
  %298 = vmatpush1.msra.mxu0 0.0
  %299 = vmatprep.subr.mxu0 0.0
  %300 = vmatpush1.msra.mxu0 0.0
  %301 = vmatprep.subr.mxu0 0.0
  %302 = vmatpush1.msra.mxu0 0.0
  %303 = vmatprep.subr.mxu0 0.0
  %304 = vmatpush1.msra.mxu0 0.0
  %305 = vmatprep.subr.mxu0 0.0
  %306 = vmatpush1.msra.mxu0 0.0
  %307 = vmatprep.mubr.f32.mxu0 0.0
  %308 = vmatmul.mubr.f32.gmra.mrb[0].mxu0 %v219
  %v309 = vpop.f32.mrb[0].mxu0
  %v310 = vadd.f32 %v241, %v309
  %v311 = vpop.f32.mrb[0].mxu0
  %312 = vdwg.mxu0
  %v313 = vmax.f32 %v310, 0.0
  %v314 = vld [vmem:[%s7] sm:$0xff]
  %v315 = vld [vmem:[%s7 + $0x8] sm:$0xff]
  %v316 = vld [vmem:[%s7 + $0x10] sm:$0xff]
  %v317 = vld [vmem:[%s7 + $0x18] sm:$0xff]
  %v318 = vld [vmem:[%s7 + $0x20] sm:$0xff]
  %v319 = vld [vmem:[%s7 + $0x28] sm:$0xff]
  %v320 = vld [vmem:[%s7 + $0x30] sm:$0xff]
  %v321 = vld [vmem:[%s7 + $0x38] sm:$0xff]
  %v322 = vld [vmem:[%s7 + $0x40] sm:$0xff]
  %v323 = vld [vmem:[%s7 + $0x48] sm:$0xff]
  %v324 = vld [vmem:[%s7 + $0x50] sm:$0xff]
  %v325 = vld [vmem:[%s7 + $0x58] sm:$0xff]
  %v326 = vld [vmem:[%s7 + $0x60] sm:$0xff]
  %v327 = vld [vmem:[%s7 + $0x68] sm:$0xff]
  %v328 = vld [vmem:[%s7 + $0x70] sm:$0xff]
  %v329 = vld [vmem:[%s7 + $0x78] sm:$0xff]
  %v330 = vld [vmem:[%s8] sm:$0x1]
  %v332 = vlaneseq
  %v333 = vshrl.u32 %v332, 7
  %v334 = vsub.s32 0, %v333
  %v335 = vrot.slane %v330, %v334
  %337 = vmatprep.subr.mxu0 0.0
  %338 = vmatpush1.msra.mxu0 %v314
  %339 = vmatprep.subr.mxu0 0.0
  %340 = vmatpush1.msra.mxu0 %v315
  %341 = vmatprep.subr.mxu0 0.0
  %342 = vmatpush1.msra.mxu0 %v316
  %343 = vmatprep.subr.mxu0 0.0
  %344 = vmatpush1.msra.mxu0 %v317
  %345 = vmatprep.subr.mxu0 0.0
  %346 = vmatpush1.msra.mxu0 %v318
  %347 = vmatprep.subr.mxu0 0.0
  %348 = vmatpush1.msra.mxu0 %v319
  %349 = vmatprep.subr.mxu0 0.0
  %350 = vmatpush1.msra.mxu0 %v320
  %351 = vmatprep.subr.mxu0 0.0
  %352 = vmatpush1.msra.mxu0 %v321
  %353 = vmatprep.subr.mxu0 0.0
  %354 = vmatpush1.msra.mxu0 %v322
  %355 = vmatprep.subr.mxu0 0.0
  %356 = vmatpush1.msra.mxu0 %v323
  %357 = vmatprep.subr.mxu0 0.0
  %358 = vmatpush1.msra.mxu0 %v324
  %359 = vmatprep.subr.mxu0 0.0
  %360 = vmatpush1.msra.mxu0 %v325
  %361 = vmatprep.subr.mxu0 0.0
  %362 = vmatpush1.msra.mxu0 %v326
  %363 = vmatprep.subr.mxu0 0.0
  %364 = vmatpush1.msra.mxu0 %v327
  %365 = vmatprep.subr.mxu0 0.0
  %366 = vmatpush1.msra.mxu0 %v328
  %367 = vmatprep.subr.mxu0 0.0
  %368 = vmatpush1.msra.mxu0 %v329
  %369 = vmatprep.subr.mxu0 0.0
  %370 = vmatpush1.msra.mxu0 0.0
  %371 = vmatprep.subr.mxu0 0.0
  %372 = vmatpush1.msra.mxu0 0.0
  %373 = vmatprep.subr.mxu0 0.0
  %374 = vmatpush1.msra.mxu0 0.0
  %375 = vmatprep.subr.mxu0 0.0
  %376 = vmatpush1.msra.mxu0 0.0
  %377 = vmatprep.subr.mxu0 0.0
  %378 = vmatpush1.msra.mxu0 0.0
  %379 = vmatprep.subr.mxu0 0.0
  %380 = vmatpush1.msra.mxu0 0.0
  %381 = vmatprep.subr.mxu0 0.0
  %382 = vmatpush1.msra.mxu0 0.0
  %383 = vmatprep.subr.mxu0 0.0
  %384 = vmatpush1.msra.mxu0 0.0
  %385 = vmatprep.subr.mxu0 0.0
  %386 = vmatpush1.msra.mxu0 0.0
  %387 = vmatprep.subr.mxu0 0.0
  %388 = vmatpush1.msra.mxu0 0.0
  %389 = vmatprep.subr.mxu0 0.0
  %390 = vmatpush1.msra.mxu0 0.0
  %391 = vmatprep.subr.mxu0 0.0
  %392 = vmatpush1.msra.mxu0 0.0
  %393 = vmatprep.subr.mxu0 0.0
  %394 = vmatpush1.msra.mxu0 0.0
  %395 = vmatprep.subr.mxu0 0.0
  %396 = vmatpush1.msra.mxu0 0.0
  %397 = vmatprep.subr.mxu0 0.0
  %398 = vmatpush1.msra.mxu0 0.0
  %399 = vmatprep.subr.mxu0 0.0
  %400 = vmatpush1.msra.mxu0 0.0
  %401 = vmatprep.mubr.f32.mxu0 0.0
  %402 = vmatmul.mubr.f32.gmra.mrb[0].mxu0 %v313
  %v403 = vpop.f32.mrb[0].mxu0
  %v404 = vadd.f32 %v335, %v403
  %v405 = vpop.f32.mrb[0].mxu0
  %406 = vdwg.mxu0
  %407 = vst [vmem:[%s9] sm:$0xff] %v404
  // Predicated region
  $region38: #{mlp_predictor_forward.1} parent=0 // pred_check
    _
  $region39: #{mlp_predictor_forward.1} parent=0 // pred_check_branch
    %409 = sbr.rel (0) target = $region41
  $region40: #{mlp_predictor_forward.1} parent=0 // pred_region
    _
  $region41: #{mlp_predictor_forward.1} parent=0 // pred_fallthru
    _
  // Predicated region
  $region42: #{mlp_predictor_forward.1} parent=0 // pred_check
    _
  $region43: #{mlp_predictor_forward.1} parent=0 // pred_check_branch
    %411 = sbr.rel (0) target = $region45
  $region44: #{mlp_predictor_forward.1} parent=0 // pred_region
    _
  $region45: #{mlp_predictor_forward.1} parent=0 // pred_fallthru
    _

</llo_original>
